<compile_context>
chip_gen: v7x
topology: tpu7x:2x2x1
jax: 0.10.0
libtpu: 0.0.40
codegen_flags: <defaults>
</compile_context>

<pallas_src>
import math

import jax
import jax.numpy as jnp
from jax import lax
from jax.experimental import pallas as pl
from jax.experimental.pallas import tpu as pltpu

EPS = 1e-5  # PyTorch BatchNorm1d default


def nascell_kernel(x_ref, w_ref, b_ref, gamma_ref, beta_ref, o_ref, acc_ref):
    """One (feature-tile j, k-tile k) grid step.

    x_ref:     [B, TK]   bf16
    w_ref:     [TK, TN]  bf16
    b_ref:     [1, TN]   f32
    gamma_ref: [1, TN]   f32
    beta_ref:  [1, TN]   f32
    o_ref:     [B, TN]   f32   (resident across the k axis)
    acc_ref:   [B, TN]   f32   VMEM scratch accumulator
    """
    k = pl.program_id(1)

    @pl.when(k == 0)
    def _init():
        acc_ref[...] = jnp.zeros_like(acc_ref)

    # MXU: bf16 x bf16 -> f32 accumulate.
    acc_ref[...] += jnp.dot(
        x_ref[...], w_ref[...], preferred_element_type=jnp.float32
    )

    @pl.when(k == pl.num_programs(1) - 1)
    def _epilogue():
        y = acc_ref[...] + b_ref[...]                       # [B, TN] f32

        # BatchNorm1d, training-mode batch stats (biased variance).
        # Reductions are over axis 0 (sublanes) -> XLU; rsqrt -> EUP.
        mean = jnp.mean(y, axis=0, keepdims=True)           # [1, TN]
        centered = y - mean
        var = jnp.mean(centered * centered, axis=0, keepdims=True)
        y_hat = centered * lax.rsqrt(var + EPS)
        out = gamma_ref[...] * y_hat + beta_ref[...]

        # activation = ReLU
        o_ref[...] = jnp.maximum(out, 0.0)


def _pad_axis(a, axis, multiple):
    pad = (-a.shape[axis]) % multiple
    if pad == 0:
        return a
    widths = [(0, 0)] * a.ndim
    widths[axis] = (0, pad)
    return jnp.pad(a, widths)


def nascell_forward(x, w, b, gamma, beta, *, tn=128, tk=128,
                    matmul_dtype=jnp.bfloat16):
    """x: [B, F_in], w: [F_in, F_out], b/gamma/beta: [1, F_out] -> [B, F_out]."""
    B, F_in = x.shape
    F_out = w.shape[1]

    # Lane-friendly padding (zero-padded K columns contribute 0 to the matmul;
    # padded output features are sliced off below).
    xp = _pad_axis(x.astype(matmul_dtype), 1, tk)
    wp = _pad_axis(_pad_axis(w.astype(matmul_dtype), 0, tk), 1, tn)
    bp = _pad_axis(b.astype(jnp.float32), 1, tn)
    gp = _pad_axis(gamma.astype(jnp.float32), 1, tn)
    bt = _pad_axis(beta.astype(jnp.float32), 1, tn)

    Kp = xp.shape[1]
    Np = wp.shape[1]
    grid = (Np // tn, Kp // tk)   # feature tiles (parallel), K tiles last (arbitrary)

    out = pl.pallas_call(
        nascell_kernel,
        out_shape=jax.ShapeDtypeStruct((B, Np), jnp.float32),
        grid_spec=pltpu.PrefetchScalarGridSpec(
            num_scalar_prefetch=0,
            grid=grid,
            in_specs=[
                pl.BlockSpec((B, tk), lambda j, k: (0, k)),   # x: full batch, K tile
                pl.BlockSpec((tk, tn), lambda j, k: (k, j)),  # w
                pl.BlockSpec((1, tn), lambda j, k: (0, j)),   # bias
                pl.BlockSpec((1, tn), lambda j, k: (0, j)),   # gamma
                pl.BlockSpec((1, tn), lambda j, k: (0, j)),   # beta
            ],
            out_specs=pl.BlockSpec((B, tn), lambda j, k: (0, j)),
            scratch_shapes=[pltpu.VMEM((B, tn), jnp.float32)],
        ),
        compiler_params=pltpu.CompilerParams(
            dimension_semantics=("parallel", "arbitrary"),
            vmem_limit_bytes=32 * 1024 * 1024,  # safe on v5e/v6e/v7x; tiles are tiny
        ),
    )(xp, wp, bp, gp, bt)

    return out[:, :F_out]


def reference_forward(x, w, b, gamma, beta, matmul_dtype=jnp.bfloat16):
    y = jnp.dot(x.astype(matmul_dtype), w.astype(matmul_dtype),
                preferred_element_type=jnp.float32) + b
    mean = jnp.mean(y, axis=0, keepdims=True)
    var = jnp.mean((y - mean) ** 2, axis=0, keepdims=True)
    y_hat = (y - mean) * lax.rsqrt(var + EPS)
    return jnp.maximum(gamma * y_hat + beta, 0.0)


if __name__ == "__main__":
    # Small but TPU-aligned shapes: sublane-aligned batch, lane-dense features.
    B, F_IN, F_OUT = 64, 128, 256

    key = jax.random.PRNGKey(0)
    kx, kw, kb = jax.random.split(key, 3)

    x = jax.random.normal(kx, (B, F_IN), dtype=jnp.float32)

    # nn.Linear default init: U(-1/sqrt(in_features), 1/sqrt(in_features)).
    bound = 1.0 / math.sqrt(F_IN)
    w = jax.random.uniform(kw, (F_IN, F_OUT), jnp.float32, -bound, bound)
    b = jax.random.uniform(kb, (1, F_OUT), jnp.float32, -bound, bound)

    # BatchNorm1d affine params: gamma=1, beta=0 (PyTorch default init).
    gamma = jnp.ones((1, F_OUT), dtype=jnp.float32)
    beta = jnp.zeros((1, F_OUT), dtype=jnp.float32)

    out = nascell_forward(x, w, b, gamma, beta)
    jax.block_until_ready(out)

    ref = reference_forward(x, w, b, gamma, beta)
    assert out.shape == (B, F_OUT)
    assert jnp.allclose(out, ref, atol=2e-3, rtol=2e-3), float(
        jnp.max(jnp.abs(out - ref)))

    print("KERNEL_OK")
</pallas_src>

<mosaic_0001>
module attributes {stable_mosaic.version = 11 : i64} {
  func.func @nascell_kernel(%arg0: i32, %arg1: i32, %arg2: memref<64x128xbf16, #tpu.memory_space<vmem>>, %arg3: memref<128x128xbf16, #tpu.memory_space<vmem>>, %arg4: memref<1x128xf32, #tpu.memory_space<vmem>>, %arg5: memref<1x128xf32, #tpu.memory_space<vmem>>, %arg6: memref<1x128xf32, #tpu.memory_space<vmem>>, %arg7: memref<64x128xf32, #tpu.memory_space<vmem>>, %arg8: memref<64x128xf32, #tpu.memory_space<vmem>>) attributes {dimension_semantics = [#tpu.dimension_semantics<parallel>, #tpu.dimension_semantics<arbitrary>], iteration_bounds = array<i64: 2, 1>, scalar_prefetch = 0 : i64, scratch_operands = 1 : i64, tpu.core_type = #tpu.core_type<tc>, window_params = [{transform_indices = @transform_0, window_bounds = array<i64: 64, 128>}, {transform_indices = @transform_1, window_bounds = array<i64: 128, 128>}, {transform_indices = @transform_2, window_bounds = array<i64: 1, 128>}, {transform_indices = @transform_3, window_bounds = array<i64: 1, 128>}, {transform_indices = @transform_4, window_bounds = array<i64: 1, 128>}, {transform_indices = @transform_5, window_bounds = array<i64: 64, 128>}]} {
    %c0_i32 = arith.constant 0 : i32
    %0 = arith.cmpi eq, %arg1, %c0_i32 : i32
    %1 = arith.extui %0 : i1 to i32
    %c0_i32_0 = arith.constant 0 : i32
    %2 = arith.cmpi ne, %1, %c0_i32_0 : i32
    scf.if %2 {
      %cst_10 = arith.constant 0.000000e+00 : f32
      %12 = vector.broadcast %cst_10 : f32 to vector<64x128xf32>
      %c0_11 = arith.constant 0 : index
      %c0_12 = arith.constant 0 : index
      %13 = vector.load %arg8[%c0_11, %c0_12] : memref<64x128xf32, #tpu.memory_space<vmem>>, vector<64x128xf32>
      tpu.vector_store %arg8[%c0_11, %c0_12], %12 {strides = array<i32>} : memref<64x128xf32, #tpu.memory_space<vmem>>, vector<64x128xf32>,
    } else {
    }
    %c0 = arith.constant 0 : index
    %c0_1 = arith.constant 0 : index
    %3 = vector.load %arg8[%c0, %c0_1] : memref<64x128xf32, #tpu.memory_space<vmem>>, vector<64x128xf32>
    %c0_2 = arith.constant 0 : index
    %c0_3 = arith.constant 0 : index
    %4 = vector.load %arg2[%c0_2, %c0_3] : memref<64x128xbf16, #tpu.memory_space<vmem>>, vector<64x128xbf16>
    %c0_4 = arith.constant 0 : index
    %c0_5 = arith.constant 0 : index
    %5 = vector.load %arg3[%c0_4, %c0_5] : memref<128x128xbf16, #tpu.memory_space<vmem>>, vector<128x128xbf16>
    %cst = arith.constant dense<0.000000e+00> : vector<64x128xf32>
    %6 = tpu.matmul %4, %5, %cst {dimension_numbers = #tpu.dot_dimension_numbers<[1], [0], [0], [1], [0, 0, 1, 1], [], []>} : vector<64x128xbf16>, vector<128x128xbf16>, vector<64x128xf32> -> vector<64x128xf32>
    %7 = arith.addf %3, %6 : vector<64x128xf32>
    %c0_6 = arith.constant 0 : index
    %c0_7 = arith.constant 0 : index
    %8 = vector.load %arg8[%c0_6, %c0_7] : memref<64x128xf32, #tpu.memory_space<vmem>>, vector<64x128xf32>
    tpu.vector_store %arg8[%c0_6, %c0_7], %7 {strides = array<i32>} : memref<64x128xf32, #tpu.memory_space<vmem>>, vector<64x128xf32>,
    %c0_i32_8 = arith.constant 0 : i32
    %9 = arith.cmpi eq, %arg1, %c0_i32_8 : i32
    %10 = arith.extui %9 : i1 to i32
    %c0_i32_9 = arith.constant 0 : i32
    %11 = arith.cmpi ne, %10, %c0_i32_9 : i32
    scf.if %11 {
      %c0_10 = arith.constant 0 : index
      %c0_11 = arith.constant 0 : index
      %12 = vector.load %arg8[%c0_10, %c0_11] : memref<64x128xf32, #tpu.memory_space<vmem>>, vector<64x128xf32>
      %c0_12 = arith.constant 0 : index
      %c0_13 = arith.constant 0 : index
      %13 = vector.load %arg4[%c0_12, %c0_13] : memref<1x128xf32, #tpu.memory_space<vmem>>, vector<1x128xf32>
      %14 = vector.broadcast %13 : vector<1x128xf32> to vector<64x128xf32>
      %15 = arith.addf %12, %14 : vector<64x128xf32>
      %cst_14 = arith.constant dense<0.000000e+00> : vector<128xf32>
      %16 = vector.multi_reduction <add>, %15, %cst_14 [0] : vector<64x128xf32> to vector<128xf32>
      %17 = vector.shape_cast %16 : vector<128xf32> to vector<1x128xf32>
      %cst_15 = arith.constant 6.400000e+01 : f32
      %18 = vector.broadcast %cst_15 : f32 to vector<1x128xf32>
      %19 = arith.divf %17, %18 : vector<1x128xf32>
      %20 = vector.broadcast %19 : vector<1x128xf32> to vector<64x128xf32>
      %21 = arith.subf %15, %20 : vector<64x128xf32>
      %22 = arith.mulf %21, %21 : vector<64x128xf32>
      %cst_16 = arith.constant dense<0.000000e+00> : vector<128xf32>
      %23 = vector.multi_reduction <add>, %22, %cst_16 [0] : vector<64x128xf32> to vector<128xf32>
      %24 = vector.shape_cast %23 : vector<128xf32> to vector<1x128xf32>
      %cst_17 = arith.constant 6.400000e+01 : f32
      %25 = vector.broadcast %cst_17 : f32 to vector<1x128xf32>
      %26 = arith.divf %24, %25 : vector<1x128xf32>
      %cst_18 = arith.constant 9.99999974E-6 : f32
      %27 = vector.broadcast %cst_18 : f32 to vector<1x128xf32>
      %28 = arith.addf %26, %27 : vector<1x128xf32>
      %29 = math.rsqrt %28 : vector<1x128xf32>
      %30 = vector.broadcast %29 : vector<1x128xf32> to vector<64x128xf32>
      %31 = arith.mulf %21, %30 : vector<64x128xf32>
      %c0_19 = arith.constant 0 : index
      %c0_20 = arith.constant 0 : index
      %32 = vector.load %arg5[%c0_19, %c0_20] : memref<1x128xf32, #tpu.memory_space<vmem>>, vector<1x128xf32>
      %33 = vector.broadcast %32 : vector<1x128xf32> to vector<64x128xf32>
      %34 = arith.mulf %33, %31 : vector<64x128xf32>
      %c0_21 = arith.constant 0 : index
      %c0_22 = arith.constant 0 : index
      %35 = vector.load %arg6[%c0_21, %c0_22] : memref<1x128xf32, #tpu.memory_space<vmem>>, vector<1x128xf32>
      %36 = vector.broadcast %35 : vector<1x128xf32> to vector<64x128xf32>
      %37 = arith.addf %34, %36 : vector<64x128xf32>
      %cst_23 = arith.constant 0.000000e+00 : f32
      %38 = vector.broadcast %cst_23 : f32 to vector<64x128xf32>
      %39 = arith.maximumf %37, %38 : vector<64x128xf32>
      %c0_24 = arith.constant 0 : index
      %c0_25 = arith.constant 0 : index
      %40 = vector.load %arg7[%c0_24, %c0_25] : memref<64x128xf32, #tpu.memory_space<vmem>>, vector<64x128xf32>
      tpu.vector_store %arg7[%c0_24, %c0_25], %39 {strides = array<i32>} : memref<64x128xf32, #tpu.memory_space<vmem>>, vector<64x128xf32>,
    } else {
    }
    return
  }
  func.func @transform_0(%arg0: i32, %arg1: i32) -> (i32, i32) {
    %c0_i32 = arith.constant 0 : i32
    %c0_i32_0 = arith.constant 0 : i32
    return %c0_i32, %arg1 : i32, i32
  }
  func.func @transform_1(%arg0: i32, %arg1: i32) -> (i32, i32) {
    %c0_i32 = arith.constant 0 : i32
    return %arg1, %arg0 : i32, i32
  }
  func.func @transform_2(%arg0: i32, %arg1: i32) -> (i32, i32) {
    %c0_i32 = arith.constant 0 : i32
    %c0_i32_0 = arith.constant 0 : i32
    return %c0_i32, %arg0 : i32, i32
  }
  func.func @transform_3(%arg0: i32, %arg1: i32) -> (i32, i32) {
    %c0_i32 = arith.constant 0 : i32
    %c0_i32_0 = arith.constant 0 : i32
    return %c0_i32, %arg0 : i32, i32
  }
  func.func @transform_4(%arg0: i32, %arg1: i32) -> (i32, i32) {
    %c0_i32 = arith.constant 0 : i32
    %c0_i32_0 = arith.constant 0 : i32
    return %c0_i32, %arg0 : i32, i32
  }
  func.func @transform_5(%arg0: i32, %arg1: i32) -> (i32, i32) {
    %c0_i32 = arith.constant 0 : i32
    %c0_i32_0 = arith.constant 0 : i32
    return %c0_i32, %arg0 : i32, i32
  }
}

</mosaic_0001>

<llo_original>
// kernel: tpu_custom_call.1
$region0: #{tpu_custom_call.1}
  #allocation0 [shape = 'u32[]', space=smem, size = 0x4, offset = 0x4, fixed_abs, tag = 'smem constant byte address 0x4 - core index']
  #allocation1 [shape = 'u32[144,128]{1,0:T(1,128)}', space=vmem, size = 0x12000, scoped, tag = 'internal scratch']
  #allocation2 [shape = 'f32[64,128]{1,0:T(8,128)}', space=vmem, size = 0x8000, scoped, tag = 'scratch operand']
  %s0 = inlined_call_operand.hbm [shape: bf16[64,128], index: 0, kind: input, shape index: {}]
  %s1 = inlined_call_operand.hbm [shape: bf16[128,256], index: 1, kind: input, shape index: {}]
  %s2 = inlined_call_operand.vmem [shape: f32[1,256], index: 2, kind: input, shape index: {}]
  %s3 = inlined_call_operand.vmem [shape: f32[1,256], index: 3, kind: input, shape index: {}]
  %s4 = inlined_call_operand.vmem [shape: f32[1,256], index: 4, kind: input, shape index: {}]
  %s5 = inlined_call_operand.hbm [shape: f32[64,256], index: 5, kind: output, shape index: {}]
  %s6 = sld [smem:[#allocation0]]
  $region69: #{tpu_custom_call.1} parent=0
    _
  %s8 = ssub.s32 1, %s6
  %s9 = scalar_select 0, %s8, %s6
  $region1: #{tpu_custom_call.1} parent=0
    #allocation3 [shape = 'u8[16384]{0}', space=vmem, size = 0x4000, scoped, tag = 'input window, operand 0, single buffered']
    #allocation4 [shape = 's32[2]{0}', space=sflag, size = 0x8, scoped, tag = 'scoped memory for tpu_custom_call.1']
    #allocation5 [shape = 's32[2]{0}', space=sflag, size = 0x8, scoped, tag = 'scoped memory for tpu_custom_call.1']
    #allocation6 [shape = 'u8[65536]{0}', space=vmem, size = 0x10000, scoped, tag = 'input window, operand 1']
    #allocation7 [shape = 's32[2]{0}', space=sflag, size = 0x8, scoped, tag = 'scoped memory for tpu_custom_call.1']
    #allocation8 [shape = 'u8[65536]{0}', space=vmem, size = 0x10000, scoped, tag = 'output window, operand 0']
    %10 = vsyncpa [#allocation4], 0
    %11 = vsyncpa [#allocation7], 0
    %s12 = scalar_lea.sflag [#allocation7], 1
    %13 = vsyncpa %s12, 0
    %14 = vsyncpa [#allocation5], 0
    %s15 = scalar_lea.sflag [#allocation5], 1
    %16 = vsyncpa %s15, 0
    loop: start=0, step=1, limit=4
    $region2: #{tpu_custom_call.1} parent=1 // loop_pre_header
      _
    $region3: #{tpu_custom_call.1} parent=1 // loop_header
      %s18 = sphi 0, %s22
      %p19 = scmp.ge.s32.totalorder %s18, 4
      %s25 = sphi 0, %s37
      %s26 = sphi 0, %s33
      %s27 = sphi 0, %s25
      %s28 = sphi 0, %s26
      %s29 = sphi 0, %s27
      %s30 = sphi 0, %s28
      %s40 = sphi 0, %s42
      %s43 = sphi 0, %s40
      %s44 = sphi 0, %s43
      %s60 = sphi 0, %s44
      %s68 = sphi 0, %s70
      %s71 = sphi 0, %s68
      %s72 = sphi 0, %s71
      %s88 = sphi 0, %s72
      %s94 = sphi 0, %s96
      %s97 = sphi 0, %s94
      %s98 = sphi 0, %s97
      %s114 = sphi 0, %s98
      %s120 = sphi 0, %s122
      %s123 = sphi 0, %s120
      %s124 = sphi 0, %s123
      %s140 = sphi 0, %s124
      %s146 = sphi 0, %s148
      %s149 = sphi 0, %s146
      %s150 = sphi 0, %s149
      %s166 = sphi 0, %s150
      %s172 = sphi 0, %s174
      %s175 = sphi 0, %s172
      %s176 = sphi 0, %s175
      %s192 = sphi 0, %s176
    $region4: #{tpu_custom_call.1} parent=1 // loop_header_branch
      %21 = sbr.rel (%p19) target = $region8
    $region5: #{tpu_custom_call.1} parent=1 // loop_body
      %s23 = ssub.s32 %s18, 1
      %s24 = ssub.s32 %s18, 2
      %s31 = sadd.s32 1, %s26
      %p32 = scmp.ge.s32.totalorder %s31, 1
      %s33 = scalar_select %p32, 0, %s31
      %s34 = sadd.s32 1, %s25
      %s35 = scalar_select %p32, %s34, %s25
      %p36 = scmp.ge.s32.totalorder %s35, 2
      %s37 = scalar_select %p36, 0, %s35
      %s38 = ssub.s32 %s26, %s33
      %p39 = scmp.eq.s32.totalorder %s38, 0
      %s41 = sadd.s32 %s40, 1
      %s42 = scalar_select %p39, %s40, %s41
      %p45 = pneg %p39
      %p46 = scmp.eq.s32.totalorder %s18, 1
      %p47 = por %p45, %p46
      %p48 = scmp.ne.s32.totalorder %s40, %s43
      %p49 = scmp.eq.s32.totalorder %s18, 0
      %p50 = por %p48, %p49
      %p51 = scmp.ne.s32.totalorder %s40, %s43
      %p52 = scmp.eq.s32.totalorder %s23, 1
      %p53 = por %p51, %p52
      %p54 = scmp.ne.s32.totalorder %s43, %s44
      %p55 = scmp.eq.s32.totalorder %s23, 0
      %p56 = por %p54, %p55
      %p57 = scmp.ne.s32.totalorder %s43, %s44
      %p58 = scmp.eq.s32.totalorder %s24, 1
      %p59 = por %p57, %p58
      %p61 = scmp.ne.s32.totalorder %s44, %s60
      %p62 = scmp.eq.s32.totalorder %s24, 0
      %p63 = por %p61, %p62
      %s64 = ssub.s32 %s26, %s33
      %s65 = ssub.s32 %s25, %s37
      %s66 = sor.u32 %s64, %s65
      %p67 = scmp.eq.s32.totalorder %s66, 0
      %s69 = sadd.s32 %s68, 1
      %s70 = scalar_select %p67, %s68, %s69
      %p73 = pneg %p67
      %p74 = scmp.eq.s32.totalorder %s18, 1
      %p75 = por %p73, %p74
      %p76 = scmp.ne.s32.totalorder %s68, %s71
      %p77 = scmp.eq.s32.totalorder %s18, 0
      %p78 = por %p76, %p77
      %p79 = scmp.ne.s32.totalorder %s68, %s71
      %p80 = scmp.eq.s32.totalorder %s23, 1
      %p81 = por %p79, %p80
      %p82 = scmp.ne.s32.totalorder %s71, %s72
      %p83 = scmp.eq.s32.totalorder %s23, 0
      %p84 = por %p82, %p83
      %p85 = scmp.ne.s32.totalorder %s71, %s72
      %p86 = scmp.eq.s32.totalorder %s24, 1
      %p87 = por %p85, %p86
      %p89 = scmp.ne.s32.totalorder %s72, %s88
      %p90 = scmp.eq.s32.totalorder %s24, 0
      %p91 = por %p89, %p90
      %s92 = ssub.s32 %s25, %s37
      %p93 = scmp.eq.s32.totalorder %s92, 0
      %s95 = sadd.s32 %s94, 1
      %s96 = scalar_select %p93, %s94, %s95
      %p99 = pneg %p93
      %p100 = scmp.eq.s32.totalorder %s18, 1
      %p101 = por %p99, %p100
      %p102 = scmp.ne.s32.totalorder %s94, %s97
      %p103 = scmp.eq.s32.totalorder %s18, 0
      %p104 = por %p102, %p103
      %p105 = scmp.ne.s32.totalorder %s94, %s97
      %p106 = scmp.eq.s32.totalorder %s23, 1
      %p107 = por %p105, %p106
      %p108 = scmp.ne.s32.totalorder %s97, %s98
      %p109 = scmp.eq.s32.totalorder %s23, 0
      %p110 = por %p108, %p109
      %p111 = scmp.ne.s32.totalorder %s97, %s98
      %p112 = scmp.eq.s32.totalorder %s24, 1
      %p113 = por %p111, %p112
      %p115 = scmp.ne.s32.totalorder %s98, %s114
      %p116 = scmp.eq.s32.totalorder %s24, 0
      %p117 = por %p115, %p116
      %s118 = ssub.s32 %s25, %s37
      %p119 = scmp.eq.s32.totalorder %s118, 0
      %s121 = sadd.s32 %s120, 1
      %s122 = scalar_select %p119, %s120, %s121
      %p125 = pneg %p119
      %p126 = scmp.eq.s32.totalorder %s18, 1
      %p127 = por %p125, %p126
      %p128 = scmp.ne.s32.totalorder %s120, %s123
      %p129 = scmp.eq.s32.totalorder %s18, 0
      %p130 = por %p128, %p129
      %p131 = scmp.ne.s32.totalorder %s120, %s123
      %p132 = scmp.eq.s32.totalorder %s23, 1
      %p133 = por %p131, %p132
      %p134 = scmp.ne.s32.totalorder %s123, %s124
      %p135 = scmp.eq.s32.totalorder %s23, 0
      %p136 = por %p134, %p135
      %p137 = scmp.ne.s32.totalorder %s123, %s124
      %p138 = scmp.eq.s32.totalorder %s24, 1
      %p139 = por %p137, %p138
      %p141 = scmp.ne.s32.totalorder %s124, %s140
      %p142 = scmp.eq.s32.totalorder %s24, 0
      %p143 = por %p141, %p142
      %s144 = ssub.s32 %s25, %s37
      %p145 = scmp.eq.s32.totalorder %s144, 0
      %s147 = sadd.s32 %s146, 1
      %s148 = scalar_select %p145, %s146, %s147
      %p151 = pneg %p145
      %p152 = scmp.eq.s32.totalorder %s18, 1
      %p153 = por %p151, %p152
      %p154 = scmp.ne.s32.totalorder %s146, %s149
      %p155 = scmp.eq.s32.totalorder %s18, 0
      %p156 = por %p154, %p155
      %p157 = scmp.ne.s32.totalorder %s146, %s149
      %p158 = scmp.eq.s32.totalorder %s23, 1
      %p159 = por %p157, %p158
      %p160 = scmp.ne.s32.totalorder %s149, %s150
      %p161 = scmp.eq.s32.totalorder %s23, 0
      %p162 = por %p160, %p161
      %p163 = scmp.ne.s32.totalorder %s149, %s150
      %p164 = scmp.eq.s32.totalorder %s24, 1
      %p165 = por %p163, %p164
      %p167 = scmp.ne.s32.totalorder %s150, %s166
      %p168 = scmp.eq.s32.totalorder %s24, 0
      %p169 = por %p167, %p168
      %s170 = ssub.s32 %s25, %s37
      %p171 = scmp.eq.s32.totalorder %s170, 0
      %s173 = sadd.s32 %s172, 1
      %s174 = scalar_select %p171, %s172, %s173
      %p177 = pneg %p171
      %p178 = scmp.eq.s32.totalorder %s18, 1
      %p179 = por %p177, %p178
      %p180 = scmp.ne.s32.totalorder %s172, %s175
      %p181 = scmp.eq.s32.totalorder %s18, 0
      %p182 = por %p180, %p181
      %p183 = scmp.ne.s32.totalorder %s172, %s175
      %p184 = scmp.eq.s32.totalorder %s23, 1
      %p185 = por %p183, %p184
      %p186 = scmp.ne.s32.totalorder %s175, %s176
      %p187 = scmp.eq.s32.totalorder %s23, 0
      %p188 = por %p186, %p187
      %p189 = scmp.ne.s32.totalorder %s175, %s176
      %p190 = scmp.eq.s32.totalorder %s24, 1
      %p191 = por %p189, %p190
      %p193 = scmp.ne.s32.totalorder %s176, %s192
      %p194 = scmp.eq.s32.totalorder %s24, 0
      %p195 = por %p193, %p194
      %p196 = scmp.le.s32.totalorder 1, %s18
      %p197 = scmp.lt.s32.totalorder %s18, 3
      %p198 = pnand %p196, %p197
      %p199 = pneg %p198
      // Predicated region
      $region9: #{tpu_custom_call.1} parent=5 // pred_check
        _
      $region10: #{tpu_custom_call.1} parent=5 // pred_check_branch
        %201 = sbr.rel (%p198) target = $region12
      $region11: #{tpu_custom_call.1} parent=5 // pred_region
        %s202 = ssub.s32 %s18, 1
        // Predicated region
        $region13: #{tpu_custom_call.1} parent=11 // pred_check
          %p203 = pneg %p56
        $region14: #{tpu_custom_call.1} parent=11 // pred_check_branch
          %205 = sbr.rel (%p203) target = $region16
        $region15: #{tpu_custom_call.1} parent=11 // pred_region
          %s207 = ssub.s32 512, 512
          %208 = vsyncadd [#allocation4], %s207
          %s209 = smul.addr %s28, 64
          %s210 = scalar_lea.hbm %s0, %s209
          %s211 = sshll.u32 [#allocation3], 4
          %s212 = int_to_ptr.vmem [resolvable:$true] %s211
          %217 = dma.hbm_to_vmem [thread:$0]  %s210, 512, %s212, [#allocation4], 64, 64, 4
        $region16: #{tpu_custom_call.1} parent=11 // pred_fallthru
          _
      $region12: #{tpu_custom_call.1} parent=5 // pred_fallthru
        _
      %p218 = scmp.lt.s32.totalorder %s18, 2
      // Predicated region
      $region17: #{tpu_custom_call.1} parent=5 // pred_check
        %p219 = pneg %p218
      $region18: #{tpu_custom_call.1} parent=5 // pred_check_branch
        %221 = sbr.rel (%p219) target = $region20
      $region19: #{tpu_custom_call.1} parent=5 // pred_region
        // Predicated region
        $region21: #{tpu_custom_call.1} parent=19 // pred_check
          %p222 = pneg %p78
        $region22: #{tpu_custom_call.1} parent=19 // pred_check_branch
          %224 = sbr.rel (%p222) target = $region24
        $region23: #{tpu_custom_call.1} parent=19 // pred_region
          %s225 = sand.u32 %s68, 1
          %s226 = scalar_lea.sflag [#allocation7], %s225
          %s227 = sand.u32 %s68, 1
          %s228 = smul.addr %s227, 64
          %s229 = scalar_lea.vmem [#allocation6], %s228
          %s230 = smul.u32 16, %s26
          %s232 = ssub.s32 1024, 1024
          %233 = vsyncadd %s226, %s232
          %s234 = smul.addr %s230, 2
          %s235 = sadd.s32 %s25, %s234
          %s236 = smul.addr %s235, 64
          %s237 = scalar_lea.hbm %s1, %s236
          %s238 = sshll.u32 %s229, 4
          %s239 = int_to_ptr.vmem [resolvable:$true] %s238
          %244 = dma.hbm_to_vmem [thread:$0]  %s237, 1024, %s239, %s226, 128, 64, 4
        $region24: #{tpu_custom_call.1} parent=19 // pred_fallthru
          _
        // Predicated region
        $region25: #{tpu_custom_call.1} parent=19 // pred_check
          %p245 = pneg %p104
        $region26: #{tpu_custom_call.1} parent=19 // pred_check_branch
          %247 = sbr.rel (%p245) target = $region28
        $region27: #{tpu_custom_call.1} parent=19 // pred_region
          %p248 = scmp.lt.s32.totalorder %s25, 1
          %s249 = scalar_select %p248, %s25, 1
          %s250 = scalar_lea.vmem %s2, %s249
        $region28: #{tpu_custom_call.1} parent=19 // pred_fallthru
          _
        // Predicated region
        $region29: #{tpu_custom_call.1} parent=19 // pred_check
          %p251 = pneg %p130
        $region30: #{tpu_custom_call.1} parent=19 // pred_check_branch
          %253 = sbr.rel (%p251) target = $region32
        $region31: #{tpu_custom_call.1} parent=19 // pred_region
          %p254 = scmp.lt.s32.totalorder %s25, 1
          %s255 = scalar_select %p254, %s25, 1
          %s256 = scalar_lea.vmem %s3, %s255
        $region32: #{tpu_custom_call.1} parent=19 // pred_fallthru
          _
        // Predicated region
        $region33: #{tpu_custom_call.1} parent=19 // pred_check
          %p257 = pneg %p156
        $region34: #{tpu_custom_call.1} parent=19 // pred_check_branch
          %259 = sbr.rel (%p257) target = $region36
        $region35: #{tpu_custom_call.1} parent=19 // pred_region
          %p260 = scmp.lt.s32.totalorder %s25, 1
          %s261 = scalar_select %p260, %s25, 1
          %s262 = scalar_lea.vmem %s4, %s261
        $region36: #{tpu_custom_call.1} parent=19 // pred_fallthru
          _
      $region20: #{tpu_custom_call.1} parent=5 // pred_fallthru
        _
      %p263 = scmp.le.s32.totalorder 1, %s18
      %p264 = scmp.lt.s32.totalorder %s18, 3
      %p265 = pnand %p263, %p264
      %p266 = pneg %p265
      // Predicated region
      $region37: #{tpu_custom_call.1} parent=5 // pred_check
        _
      $region38: #{tpu_custom_call.1} parent=5 // pred_check_branch
        %268 = sbr.rel (%p265) target = $region40
      $region39: #{tpu_custom_call.1} parent=5 // pred_region
        %s269 = ssub.s32 %s18, 1
        // Predicated region
        $region41: #{tpu_custom_call.1} parent=39 // pred_check
          %p270 = pneg %p56
        $region42: #{tpu_custom_call.1} parent=39 // pred_check_branch
          %272 = sbr.rel (%p270) target = $region44
        $region43: #{tpu_custom_call.1} parent=39 // pred_region
          %273 = dma.done [#allocation4], 512
        $region44: #{tpu_custom_call.1} parent=39 // pred_fallthru
          _
        %s274 = sand.u32 %s71, 1
        %s275 = scalar_lea.sflag [#allocation7], %s274
        %s276 = sand.u32 %s71, 1
        %s277 = smul.addr %s276, 64
        %s278 = scalar_lea.vmem [#allocation6], %s277
        // Predicated region
        $region45: #{tpu_custom_call.1} parent=39 // pred_check
          %p279 = pneg %p84
        $region46: #{tpu_custom_call.1} parent=39 // pred_check_branch
          %281 = sbr.rel (%p279) target = $region48
        $region47: #{tpu_custom_call.1} parent=39 // pred_region
          %282 = dma.done %s275, 1024
        $region48: #{tpu_custom_call.1} parent=39 // pred_fallthru
          _
        %p283 = pneg %p56
        %p284 = pneg %p53
        %s285 = sand.u32 %s71, 1
        %s286 = scalar_lea.sflag [#allocation7], %s285
        %s287 = sand.u32 %s71, 1
        %s288 = smul.addr %s287, 64
        %s289 = scalar_lea.vmem [#allocation6], %s288
        %p290 = pneg %p84
        %p291 = pneg %p81
        %p292 = scmp.lt.s32.totalorder %s27, 1
        %s293 = scalar_select %p292, %s27, 1
        %s294 = scalar_lea.vmem %s2, %s293
        %p295 = pneg %p110
        %p296 = pneg %p107
        %p297 = scmp.lt.s32.totalorder %s27, 1
        %s298 = scalar_select %p297, %s27, 1
        %s299 = scalar_lea.vmem %s3, %s298
        %p300 = pneg %p136
        %p301 = pneg %p133
        %p302 = scmp.lt.s32.totalorder %s27, 1
        %s303 = scalar_select %p302, %s27, 1
        %s304 = scalar_lea.vmem %s4, %s303
        %p305 = pneg %p162
        %p306 = pneg %p159
        %p307 = pneg %p188
        %p308 = pneg %p185
        %s309 = sand.u32 %s175, 1
        %s310 = scalar_lea.sflag [#allocation5], %s309
        %s311 = sand.u32 %s175, 1
        %s312 = smul.addr %s311, 64
        %s313 = scalar_lea.vmem [#allocation8], %s312
        %s314 = smul.u32 16, %s28
        %p315 = scmp.lt.s32.totalorder %s27, 1
        %s316 = scalar_select %p315, %s27, 1
        %s317 = scalar_lea.vmem %s2, %s316
        %p318 = scmp.lt.s32.totalorder %s27, 1
        %s319 = scalar_select %p318, %s27, 1
        %s320 = scalar_lea.vmem %s3, %s319
        %p321 = scmp.lt.s32.totalorder %s27, 1
        %s322 = scalar_select %p321, %s27, 1
        %s323 = scalar_lea.vmem %s4, %s322
        %p325 = scmp.eq.s32.totalorder %s28, 0
        // Predicated region
        $region49: #{tpu_custom_call.1} parent=39 // pred_check
          %p326 = pneg %p325
        $region50: #{tpu_custom_call.1} parent=39 // pred_check_branch
          %328 = sbr.rel (%p326) target = $region52
        $region51: #{tpu_custom_call.1} parent=39 // pred_region
          %329 = vst [vmem:[#allocation2] sm:$0xff] 0.0
          %330 = vst [vmem:[#allocation2 + $0x8] sm:$0xff] 0.0
          %331 = vst [vmem:[#allocation2 + $0x10] sm:$0xff] 0.0
          %332 = vst [vmem:[#allocation2 + $0x18] sm:$0xff] 0.0
          %333 = vst [vmem:[#allocation2 + $0x20] sm:$0xff] 0.0
          %334 = vst [vmem:[#allocation2 + $0x28] sm:$0xff] 0.0
          %335 = vst [vmem:[#allocation2 + $0x30] sm:$0xff] 0.0
          %336 = vst [vmem:[#allocation2 + $0x38] sm:$0xff] 0.0
        $region52: #{tpu_custom_call.1} parent=39 // pred_fallthru
          _
        %v337 = vld [vmem:[#allocation2] sm:$0xff]
        %v338 = vld [vmem:[#allocation2 + $0x8] sm:$0xff]
        %v339 = vld [vmem:[#allocation2 + $0x10] sm:$0xff]
        %v340 = vld [vmem:[#allocation2 + $0x18] sm:$0xff]
        %v341 = vld [vmem:[#allocation2 + $0x20] sm:$0xff]
        %v342 = vld [vmem:[#allocation2 + $0x28] sm:$0xff]
        %v343 = vld [vmem:[#allocation2 + $0x30] sm:$0xff]
        %v344 = vld [vmem:[#allocation2 + $0x38] sm:$0xff]
        %v345 = vld [vmem:[#allocation3] sm:$0xf]
        %v346 = vld [vmem:[#allocation3 + $0x4] sm:$0xf]
        %v347 = vld [vmem:[#allocation3 + $0x8] sm:$0xf]
        %v348 = vld [vmem:[#allocation3 + $0xc] sm:$0xf]
        %v349 = vld [vmem:[#allocation3 + $0x10] sm:$0xf]
        %v350 = vld [vmem:[#allocation3 + $0x14] sm:$0xf]
        %v351 = vld [vmem:[#allocation3 + $0x18] sm:$0xf]
        %v352 = vld [vmem:[#allocation3 + $0x1c] sm:$0xf]
        %v353 = vld [vmem:[%s278] sm:$0xf]
        %v354 = vld [vmem:[%s278 + $0x4] sm:$0xf]
        %v355 = vld [vmem:[%s278 + $0x8] sm:$0xf]
        %v356 = vld [vmem:[%s278 + $0xc] sm:$0xf]
        %v357 = vld [vmem:[%s278 + $0x10] sm:$0xf]
        %v358 = vld [vmem:[%s278 + $0x14] sm:$0xf]
        %v359 = vld [vmem:[%s278 + $0x18] sm:$0xf]
        %v360 = vld [vmem:[%s278 + $0x1c] sm:$0xf]
        %v361 = vld [vmem:[%s278 + $0x20] sm:$0xf]
        %v362 = vld [vmem:[%s278 + $0x24] sm:$0xf]
        %v363 = vld [vmem:[%s278 + $0x28] sm:$0xf]
        %v364 = vld [vmem:[%s278 + $0x2c] sm:$0xf]
        %v365 = vld [vmem:[%s278 + $0x30] sm:$0xf]
        %v366 = vld [vmem:[%s278 + $0x34] sm:$0xf]
        %v367 = vld [vmem:[%s278 + $0x38] sm:$0xf]
        %v368 = vld [vmem:[%s278 + $0x3c] sm:$0xf]
        %v377 = vunpack.c.l.b16 %v345
        %v378 = vunpack.c.l.b16 %v346
        %v379 = vunpack.c.l.b16 %v347
        %v380 = vunpack.c.l.b16 %v348
        %v381 = vunpack.c.l.b16 %v349
        %v382 = vunpack.c.l.b16 %v350
        %v383 = vunpack.c.l.b16 %v351
        %v384 = vunpack.c.l.b16 %v352
        %v385 = vpack.c.b16 %v378, %v377
        %v386 = vpack.c.b16 %v380, %v379
        %v387 = vpack.c.b16 %v382, %v381
        %v388 = vpack.c.b16 %v384, %v383
        %v409 = vunpack.c.l.b16 %v353
        %v410 = vunpack.c.l.b16 %v354
        %v411 = vunpack.c.l.b16 %v355
        %v412 = vunpack.c.l.b16 %v356
        %v413 = vunpack.c.l.b16 %v357
        %v414 = vunpack.c.l.b16 %v358
        %v415 = vunpack.c.l.b16 %v359
        %v416 = vunpack.c.l.b16 %v360
        %v417 = vunpack.c.l.b16 %v361
        %v418 = vunpack.c.l.b16 %v362
        %v419 = vunpack.c.l.b16 %v363
        %v420 = vunpack.c.l.b16 %v364
        %v421 = vunpack.c.l.b16 %v365
        %v422 = vunpack.c.l.b16 %v366
        %v423 = vunpack.c.l.b16 %v367
        %v424 = vunpack.c.l.b16 %v368
        %v425 = vpack.c.b16 %v410, %v409
        %v426 = vpack.c.b16 %v412, %v411
        %v427 = vpack.c.b16 %v414, %v413
        %v428 = vpack.c.b16 %v416, %v415
        %v429 = vpack.c.b16 %v418, %v417
        %v430 = vpack.c.b16 %v420, %v419
        %v431 = vpack.c.b16 %v422, %v421
        %v432 = vpack.c.b16 %v424, %v423
        %441 = vmatprep.subr.bf16.mxu0 0
        %442 = vmatpush1.bf16.msra.mxu0 %v425
        %443 = vmatprep.subr.bf16.mxu0 0
        %444 = vmatpush1.bf16.msra.mxu0 %v426
        %445 = vmatprep.subr.bf16.mxu0 0
        %446 = vmatpush1.bf16.msra.mxu0 %v427
        %447 = vmatprep.subr.bf16.mxu0 0
        %448 = vmatpush1.bf16.msra.mxu0 %v428
        %449 = vmatprep.subr.bf16.mxu0 0
        %450 = vmatpush1.bf16.msra.mxu0 %v429
        %451 = vmatprep.subr.bf16.mxu0 0
        %452 = vmatpush1.bf16.msra.mxu0 %v430
        %453 = vmatprep.subr.bf16.mxu0 0
        %454 = vmatpush1.bf16.msra.mxu0 %v431
        %455 = vmatprep.subr.bf16.mxu0 0
        %456 = vmatpush1.bf16.msra.mxu0 %v432
        %457 = vmatprep.subr.bf16.mxu0 0
        %458 = vmatpush1.bf16.msra.mxu0 0
        %459 = vmatprep.subr.bf16.mxu0 0
        %460 = vmatpush1.bf16.msra.mxu0 0
        %461 = vmatprep.subr.bf16.mxu0 0
        %462 = vmatpush1.bf16.msra.mxu0 0
        %463 = vmatprep.subr.bf16.mxu0 0
        %464 = vmatpush1.bf16.msra.mxu0 0
        %465 = vmatprep.subr.bf16.mxu0 0
        %466 = vmatpush1.bf16.msra.mxu0 0
        %467 = vmatprep.subr.bf16.mxu0 0
        %468 = vmatpush1.bf16.msra.mxu0 0
        %469 = vmatprep.subr.bf16.mxu0 0
        %470 = vmatpush1.bf16.msra.mxu0 0
        %471 = vmatprep.subr.bf16.mxu0 0
        %472 = vmatpush1.bf16.msra.mxu0 0
        %473 = vmatprep.mubr.bf16.mxu0 0
        %474 = vmatmul.mubr.bf16.gmra.mrb[0].mxu0 %v385
        %v475 = vpop.f32.mrb[0].mxu0
        %v476 = vadd.f32 0.0, %v475
        %v477 = vpop.f32.mrb[0].mxu0
        %v478 = vpop.f32.mrb[0].mxu0
        %v479 = vadd.f32 0.0, %v478
        %v480 = vpop.f32.mrb[0].mxu0
        %481 = vmatprep.mubr.bf16.mxu0 0
        %482 = vmatmul.mubr.bf16.gmra.mrb[0].mxu0 %v386
        %v483 = vpop.f32.mrb[0].mxu0
        %v484 = vadd.f32 0.0, %v483
        %v485 = vpop.f32.mrb[0].mxu0
        %v486 = vpop.f32.mrb[0].mxu0
        %v487 = vadd.f32 0.0, %v486
        %v488 = vpop.f32.mrb[0].mxu0
        %489 = vmatprep.mubr.bf16.mxu0 0
        %490 = vmatmul.mubr.bf16.gmra.mrb[0].mxu0 %v387
        %v491 = vpop.f32.mrb[0].mxu0
        %v492 = vadd.f32 0.0, %v491
        %v493 = vpop.f32.mrb[0].mxu0
        %v494 = vpop.f32.mrb[0].mxu0
        %v495 = vadd.f32 0.0, %v494
        %v496 = vpop.f32.mrb[0].mxu0
        %497 = vmatprep.mubr.bf16.mxu0 0
        %498 = vmatmul.mubr.bf16.gmra.mrb[0].mxu0 %v388
        %v499 = vpop.f32.mrb[0].mxu0
        %v500 = vadd.f32 0.0, %v499
        %v501 = vpop.f32.mrb[0].mxu0
        %v502 = vpop.f32.mrb[0].mxu0
        %v503 = vadd.f32 0.0, %v502
        %v504 = vpop.f32.mrb[0].mxu0
        %505 = vdwg.mxu0
        %v506 = vadd.f32 %v337, %v476
        %v507 = vadd.f32 %v338, %v479
        %v508 = vadd.f32 %v339, %v484
        %v509 = vadd.f32 %v340, %v487
        %v510 = vadd.f32 %v341, %v492
        %v511 = vadd.f32 %v342, %v495
        %v512 = vadd.f32 %v343, %v500
        %v513 = vadd.f32 %v344, %v503
        %514 = vst [vmem:[#allocation2] sm:$0xff] %v506
        %515 = vst [vmem:[#allocation2 + $0x8] sm:$0xff] %v507
        %516 = vst [vmem:[#allocation2 + $0x10] sm:$0xff] %v508
        %517 = vst [vmem:[#allocation2 + $0x18] sm:$0xff] %v509
        %518 = vst [vmem:[#allocation2 + $0x20] sm:$0xff] %v510
        %519 = vst [vmem:[#allocation2 + $0x28] sm:$0xff] %v511
        %520 = vst [vmem:[#allocation2 + $0x30] sm:$0xff] %v512
        %521 = vst [vmem:[#allocation2 + $0x38] sm:$0xff] %v513
        // Predicated region
        $region53: #{tpu_custom_call.1} parent=39 // pred_check
          %p522 = pneg %p325
        $region54: #{tpu_custom_call.1} parent=39 // pred_check_branch
          %524 = sbr.rel (%p522) target = $region56
        $region55: #{tpu_custom_call.1} parent=39 // pred_region
          %v525 = vld [vmem:[#allocation2] sm:$0xff]
          %v526 = vld [vmem:[#allocation2 + $0x8] sm:$0xff]
          %v527 = vld [vmem:[#allocation2 + $0x10] sm:$0xff]
          %v528 = vld [vmem:[#allocation2 + $0x18] sm:$0xff]
          %v529 = vld [vmem:[#allocation2 + $0x20] sm:$0xff]
          %v530 = vld [vmem:[#allocation2 + $0x28] sm:$0xff]
          %v531 = vld [vmem:[#allocation2 + $0x30] sm:$0xff]
          %v532 = vld [vmem:[#allocation2 + $0x38] sm:$0xff]
          %v533 = vld [vmem:[%s317] sm:$0x1]
          %v535 = vlaneseq
          %v536 = vshrl.u32 %v535, 7
          %v537 = vsub.s32 0, %v536
          %v538 = vrot.slane %v533, %v537
          %v540 = vadd.f32 %v525, %v538
          %v541 = vadd.f32 %v526, %v538
          %v542 = vadd.f32 %v527, %v538
          %v543 = vadd.f32 %v528, %v538
          %v544 = vadd.f32 %v529, %v538
          %v545 = vadd.f32 %v530, %v538
          %v546 = vadd.f32 %v531, %v538
          %v547 = vadd.f32 %v532, %v538
          %v548 = vadd.f32 %v540, %v541
          %v549 = vadd.f32 %v548, %v542
          %v550 = vadd.f32 %v549, %v543
          %v551 = vadd.f32 %v550, %v544
          %v552 = vadd.f32 %v551, %v545
          %v553 = vadd.f32 %v552, %v546
          %v554 = vadd.f32 %v553, %v547
          %v555 = vrot.slane %v554, 4
          %v556 = vadd.f32 %v554, %v555
          %v557 = vrot.slane %v556, 2
          %v558 = vadd.f32 %v556, %v557
          %v559 = vrot.slane %v558, 1
          %v560 = vadd.f32 %v558, %v559
          %v561 = vrcp.pop 64.0
          %v562 = vmul.f32 %v560, %v561
          %v563 = vsub.f32 %v540, %v562
          %v564 = vsub.f32 %v541, %v562
          %v565 = vsub.f32 %v542, %v562
          %v566 = vsub.f32 %v543, %v562
          %v567 = vsub.f32 %v544, %v562
          %v568 = vsub.f32 %v545, %v562
          %v569 = vsub.f32 %v546, %v562
          %v570 = vsub.f32 %v547, %v562
          %v571 = vmul.f32 %v563, %v563
          %v572 = vmul.f32 %v564, %v564
          %v573 = vmul.f32 %v565, %v565
          %v574 = vmul.f32 %v566, %v566
          %v575 = vmul.f32 %v567, %v567
          %v576 = vmul.f32 %v568, %v568
          %v577 = vmul.f32 %v569, %v569
          %v578 = vmul.f32 %v570, %v570
          %v579 = vadd.f32 %v571, %v572
          %v580 = vadd.f32 %v579, %v573
          %v581 = vadd.f32 %v580, %v574
          %v582 = vadd.f32 %v581, %v575
          %v583 = vadd.f32 %v582, %v576
          %v584 = vadd.f32 %v583, %v577
          %v585 = vadd.f32 %v584, %v578
          %v586 = vrot.slane %v585, 4
          %v587 = vadd.f32 %v585, %v586
          %v588 = vrot.slane %v587, 2
          %v589 = vadd.f32 %v587, %v588
          %v590 = vrot.slane %v589, 1
          %v591 = vadd.f32 %v589, %v590
          %v592 = vmul.f32 %v591, %v561
          %v593 = vadd.f32 %v592, 1e-05
          %v594 = vrsqrt.pop %v593
          %v595 = vmul.f32 %v563, %v594
          %v596 = vmul.f32 %v564, %v594
          %v597 = vmul.f32 %v565, %v594
          %v598 = vmul.f32 %v566, %v594
          %v599 = vmul.f32 %v567, %v594
          %v600 = vmul.f32 %v568, %v594
          %v601 = vmul.f32 %v569, %v594
          %v602 = vmul.f32 %v570, %v594
          %v603 = vld [vmem:[%s320] sm:$0x1]
          %v605 = vlaneseq
          %v606 = vshrl.u32 %v605, 7
          %v607 = vsub.s32 0, %v606
          %v608 = vrot.slane %v603, %v607
          %v610 = vmul.f32 %v608, %v595
          %v611 = vmul.f32 %v608, %v596
          %v612 = vmul.f32 %v608, %v597
          %v613 = vmul.f32 %v608, %v598
          %v614 = vmul.f32 %v608, %v599
          %v615 = vmul.f32 %v608, %v600
          %v616 = vmul.f32 %v608, %v601
          %v617 = vmul.f32 %v608, %v602
          %v618 = vld [vmem:[%s323] sm:$0x1]
          %v620 = vlaneseq
          %v621 = vshrl.u32 %v620, 7
          %v622 = vsub.s32 0, %v621
          %v623 = vrot.slane %v618, %v622
          %v625 = vadd.f32 %v610, %v623
          %v626 = vadd.f32 %v611, %v623
          %v627 = vadd.f32 %v612, %v623
          %v628 = vadd.f32 %v613, %v623
          %v629 = vadd.f32 %v614, %v623
          %v630 = vadd.f32 %v615, %v623
          %v631 = vadd.f32 %v616, %v623
          %v632 = vadd.f32 %v617, %v623
          %v633 = vmax.f32 %v625, 0.0
          %v634 = vmax.f32 %v626, 0.0
          %v635 = vmax.f32 %v627, 0.0
          %v636 = vmax.f32 %v628, 0.0
          %v637 = vmax.f32 %v629, 0.0
          %v638 = vmax.f32 %v630, 0.0
          %v639 = vmax.f32 %v631, 0.0
          %v640 = vmax.f32 %v632, 0.0
          %641 = vst [vmem:[%s313] sm:$0xff] %v633
          %642 = vst [vmem:[%s313 + $0x8] sm:$0xff] %v634
          %643 = vst [vmem:[%s313 + $0x10] sm:$0xff] %v635
          %644 = vst [vmem:[%s313 + $0x18] sm:$0xff] %v636
          %645 = vst [vmem:[%s313 + $0x20] sm:$0xff] %v637
          %646 = vst [vmem:[%s313 + $0x28] sm:$0xff] %v638
          %647 = vst [vmem:[%s313 + $0x30] sm:$0xff] %v639
          %648 = vst [vmem:[%s313 + $0x38] sm:$0xff] %v640
        $region56: #{tpu_custom_call.1} parent=39 // pred_fallthru
          _
        %s649 = sand.u32 %s175, 1
        %s650 = scalar_lea.sflag [#allocation5], %s649
        %s651 = sand.u32 %s175, 1
        %s652 = smul.addr %s651, 64
        %s653 = scalar_lea.vmem [#allocation8], %s652
        // Predicated region
        $region57: #{tpu_custom_call.1} parent=39 // pred_check
          %p654 = pneg %p185
        $region58: #{tpu_custom_call.1} parent=39 // pred_check_branch
          %656 = sbr.rel (%p654) target = $region60
        $region59: #{tpu_custom_call.1} parent=39 // pred_region
          %s658 = ssub.s32 1024, 1024
          %659 = vsyncadd %s650, %s658
          %s660 = smul.addr %s27, 128
          %s661 = scalar_lea.hbm %s5, %s660
          %s662 = sshll.u32 %s653, 4
          %s663 = int_to_ptr.vmem [resolvable:$true] %s662
          %668 = dma.vmem_to_hbm [thread:$0]  %s663, 1024, %s661, %s650, 128, 256, 8
        $region60: #{tpu_custom_call.1} parent=39 // pred_fallthru
          _
      $region40: #{tpu_custom_call.1} parent=5 // pred_fallthru
        _
      %p669 = scmp.le.s32.totalorder 2, %s18
      // Predicated region
      $region61: #{tpu_custom_call.1} parent=5 // pred_check
        %p670 = pneg %p669
      $region62: #{tpu_custom_call.1} parent=5 // pred_check_branch
        %672 = sbr.rel (%p670) target = $region64
      $region63: #{tpu_custom_call.1} parent=5 // pred_region
        %s673 = ssub.s32 %s18, 2
        // Predicated region
        $region65: #{tpu_custom_call.1} parent=63 // pred_check
          %p674 = pneg %p191
        $region66: #{tpu_custom_call.1} parent=63 // pred_check_branch
          %676 = sbr.rel (%p674) target = $region68
        $region67: #{tpu_custom_call.1} parent=63 // pred_region
          %s677 = sand.u32 %s176, 1
          %s678 = scalar_lea.sflag [#allocation5], %s677
          %s679 = sand.u32 %s176, 1
          %s680 = smul.addr %s679, 64
          %s681 = scalar_lea.vmem [#allocation8], %s680
          %682 = dma.done %s678, 1024
        $region68: #{tpu_custom_call.1} parent=63 // pred_fallthru
          _
      $region64: #{tpu_custom_call.1} parent=5 // pred_fallthru
        _
    $region6: #{tpu_custom_call.1} parent=1 // loop_footer
      %s22 = sadd.s32 1, %s18
    $region7: #{tpu_custom_call.1} parent=1 // loop_footer_branch
      %17 = sbr.rel target = $region3
    $region8: #{tpu_custom_call.1} parent=1 // loop_exit
      _
    %683 = vsyncpa [#allocation4], 1
    %s684 = scalar_lea.sflag [#allocation4], 1
    %685 = vsyncpa %s684, 1
    %686 = vsyncpa [#allocation7], 1
    %s687 = scalar_lea.sflag [#allocation7], 1
    %688 = vsyncpa %s687, 1
    %689 = vsyncpa [#allocation5], 1
    %s690 = scalar_lea.sflag [#allocation5], 1
    %691 = vsyncpa %s690, 1

</llo_original>
